<compile_context>
chip_gen: v5e
topology: v5e:2x2
jax: 0.10.0
libtpu: 0.0.40
codegen_flags: <defaults>
</compile_context>

<pallas_src>
import functools

import jax
import jax.numpy as jnp
from jax import lax
from jax.experimental import pallas as pl
from jax.experimental.pallas import tpu as pltpu

FEAT = 256  # in_features == out_features == 256


def _round_up(x, m):
    return (x + m - 1) // m * m


def _choose_tile_m(M, tile_m):
    # Sublane-aligned clamp to the problem size.
    tm = min(tile_m, _round_up(M, 8))
    # When M is big enough, guarantee >= 4 grid steps so v7x's 2 TensorCores
    # each get >= 2 steps (megacore sharding + pipelining) and the trailing
    # ragged block is not a nearly-empty step.
    if M > 4 * 8:
        tm = min(tm, _round_up(-(-M // 4), 8))
    return max(tm, 8)


def _linear_kernel(x_ref, w_ref, b_ref, o_ref):
    # x_ref : (TM, 256)  input row-tile (ragged last block zero-padded)
    # w_ref : (256, 256) weight in nn.Linear layout (out_features, in_features)
    # b_ref : (1, 256)   bias
    # o_ref : (TM, 256)  output row-tile
    acc = lax.dot_general(
        x_ref[...],
        w_ref[...],
        dimension_numbers=(((1,), (1,)), ((), ())),  # contract in_features dims
        preferred_element_type=jnp.float32,
    )
    o_ref[...] = (acc + b_ref[...]).astype(o_ref.dtype)


@functools.partial(jax.jit, static_argnames=("tile_m",))
def domain_trans_forward(feat, weight, bias, *, tile_m=2048):
    """feat: (B, T, 256); weight: (256, 256) = (out, in); bias: (256,)."""
    B, T, F = feat.shape
    assert F == FEAT
    M = B * T

    tm = _choose_tile_m(M, tile_m)
    grid_m = pl.cdiv(M, tm)

    x2d = feat.reshape(M, F)
    b2d = bias.reshape(1, F)

    itemsize = jnp.dtype(feat.dtype).itemsize
    cost = pl.CostEstimate(
        flops=2 * M * F * F,
        bytes_accessed=(
            M * F * itemsize                                    # x read
            + M * F * itemsize                                  # y write
            + F * F * jnp.dtype(weight.dtype).itemsize          # W read (once)
            + F * jnp.dtype(bias.dtype).itemsize                # b read (once)
        ),
        transcendentals=0,
    )

    out2d = pl.pallas_call(
        _linear_kernel,
        out_shape=jax.ShapeDtypeStruct((M, F), feat.dtype),
        grid_spec=pltpu.PrefetchScalarGridSpec(
            num_scalar_prefetch=0,
            grid=(grid_m,),
            in_specs=[
                pl.BlockSpec((tm, F), lambda i: (i, 0)),   # x row-tile (streamed)
                pl.BlockSpec((F, F), lambda i: (0, 0)),    # W (resident: const index)
                pl.BlockSpec((1, F), lambda i: (0, 0)),    # bias (resident)
            ],
            out_specs=pl.BlockSpec((tm, F), lambda i: (i, 0)),
        ),
        compiler_params=pltpu.CompilerParams(
            dimension_semantics=("parallel",),
        ),
        cost_estimate=cost,
    )(x2d, weight, b2d)

    return out2d.reshape(B, T, F)


if __name__ == "__main__":
    key = jax.random.PRNGKey(0)
    k_feat, k_w, k_b = jax.random.split(key, 3)

    B, T = 2, 8
    feat = jax.random.normal(k_feat, (B, T, FEAT), dtype=jnp.float32)

    # Deterministic params (mimic nn.Linear's uniform(-1/sqrt(in), 1/sqrt(in)))
    bound = 1.0 / jnp.sqrt(jnp.float32(FEAT))
    weight = jax.random.uniform(
        k_w, (FEAT, FEAT), minval=-bound, maxval=bound, dtype=jnp.float32
    )  # (out_features, in_features)
    bias = jax.random.uniform(
        k_b, (FEAT,), minval=-bound, maxval=bound, dtype=jnp.float32
    )

    out = domain_trans_forward(feat, weight, bias)
    jax.block_until_ready(out)

    # Cross-check against plain-JAX reference of the same math.
    ref = feat @ weight.T + bias
    assert out.shape == (B, T, FEAT)
    assert jnp.allclose(out, ref, atol=1e-5, rtol=1e-5)

    # Exercise a non-tile-divisible M to validate the ragged-last-block path
    # (M = 231 -> tm = 64, grid of 4 steps, last block has 39 live rows).
    B2, T2 = 3, 77
    feat2 = jax.random.normal(k_feat, (B2, T2, FEAT), dtype=jnp.float32)
    out2 = domain_trans_forward(feat2, weight, bias)
    jax.block_until_ready(out2)
    ref2 = feat2 @ weight.T + bias
    assert jnp.allclose(out2, ref2, atol=1e-5, rtol=1e-5)

    print("KERNEL_OK")
</pallas_src>

<mosaic_0001>
module attributes {stable_mosaic.version = 11 : i64} {
  func.func @_linear_kernel(%arg0: i32, %arg1: memref<16x256xf32, #tpu.memory_space<vmem>>, %arg2: memref<256x256xf32, #tpu.memory_space<vmem>>, %arg3: memref<1x256xf32, #tpu.memory_space<vmem>>, %arg4: memref<16x256xf32, #tpu.memory_space<vmem>>) attributes {dimension_semantics = [#tpu.dimension_semantics<parallel>], iteration_bounds = array<i64: 1>, scalar_prefetch = 0 : i64, scratch_operands = 0 : i64, tpu.core_type = #tpu.core_type<tc>, window_params = [{transform_indices = @transform_0, window_bounds = array<i64: 16, 256>}, {pipeline_mode = #tpu.pipeline_mode<synchronous>, transform_indices = @transform_1, window_bounds = array<i64: 256, 256>}, {pipeline_mode = #tpu.pipeline_mode<synchronous>, transform_indices = @transform_2, window_bounds = array<i64: 1, 256>}, {transform_indices = @transform_3, window_bounds = array<i64: 16, 256>}]} {
    %c0 = arith.constant 0 : index
    %c0_0 = arith.constant 0 : index
    %0 = vector.load %arg1[%c0, %c0_0] : memref<16x256xf32, #tpu.memory_space<vmem>>, vector<16x256xf32>
    %c0_1 = arith.constant 0 : index
    %c0_2 = arith.constant 0 : index
    %1 = vector.load %arg2[%c0_1, %c0_2] : memref<256x256xf32, #tpu.memory_space<vmem>>, vector<256x256xf32>
    %cst = arith.constant dense<0.000000e+00> : vector<16x256xf32>
    %2 = tpu.matmul %0, %1, %cst {dimension_numbers = #tpu.dot_dimension_numbers<[1], [1], [0], [0], [0, 0, 1, 0], [], []>} : vector<16x256xf32>, vector<256x256xf32>, vector<16x256xf32> -> vector<16x256xf32>
    %c0_3 = arith.constant 0 : index
    %c0_4 = arith.constant 0 : index
    %3 = vector.load %arg3[%c0_3, %c0_4] : memref<1x256xf32, #tpu.memory_space<vmem>>, vector<1x256xf32>
    %4 = vector.broadcast %3 : vector<1x256xf32> to vector<16x256xf32>
    %5 = arith.addf %2, %4 : vector<16x256xf32>
    %c0_5 = arith.constant 0 : index
    %c0_6 = arith.constant 0 : index
    %6 = vector.load %arg4[%c0_5, %c0_6] : memref<16x256xf32, #tpu.memory_space<vmem>>, vector<16x256xf32>
    tpu.vector_store %arg4[%c0_5, %c0_6], %5 {strides = array<i32>} : memref<16x256xf32, #tpu.memory_space<vmem>>, vector<16x256xf32>,
    return
  }
  func.func @transform_0(%arg0: i32) -> (i32, i32) {
    %c0_i32 = arith.constant 0 : i32
    %c0_i32_0 = arith.constant 0 : i32
    return %arg0, %c0_i32 : i32, i32
  }
  func.func @transform_1(%arg0: i32) -> (i32, i32) {
    %c0_i32 = arith.constant 0 : i32
    %c0_i32_0 = arith.constant 0 : i32
    %c0_i32_1 = arith.constant 0 : i32
    return %c0_i32, %c0_i32_0 : i32, i32
  }
  func.func @transform_2(%arg0: i32) -> (i32, i32) {
    %c0_i32 = arith.constant 0 : i32
    %c0_i32_0 = arith.constant 0 : i32
    %c0_i32_1 = arith.constant 0 : i32
    return %c0_i32, %c0_i32_0 : i32, i32
  }
  func.func @transform_3(%arg0: i32) -> (i32, i32) {
    %c0_i32 = arith.constant 0 : i32
    %c0_i32_0 = arith.constant 0 : i32
    return %arg0, %c0_i32 : i32, i32
  }
}

</mosaic_0001>

<llo_original>
// kernel: domain_trans_forward.1
$region0: #{domain_trans_forward.1}
  #allocation0 [shape = 'u32[]', space=smem, size = 0x4, offset = 0x4, fixed_abs, tag = 'smem constant byte address 0x4 - core index']
  #allocation1 [shape = 'u32[72,128]{1,0:T(1,128)}', space=vmem, size = 0x9000, scoped, tag = 'internal scratch']
  %s0 = inlined_call_operand.hbm [shape: f32[16,256], index: 0, kind: input, shape index: {}]
  %s1 = inlined_call_operand.hbm [shape: f32[256,256], index: 1, kind: input, shape index: {}]
  %s2 = inlined_call_operand.vmem [shape: f32[1,256], index: 2, kind: input, shape index: {}]
  %s3 = inlined_call_operand.hbm [shape: f32[16,256], index: 3, kind: output, shape index: {}]
  %s4 = sld [smem:[#allocation0]]
  $region30: #{domain_trans_forward.1} parent=0
    _
  %s6 = ssub.s32 1, %s4
  %s7 = scalar_select 0, %s6, %s4
  $region1: #{domain_trans_forward.1} parent=0
    #allocation2 [shape = 'u8[16384]{0}', space=vmem, size = 0x4000, scoped, tag = 'input window, operand 0, single buffered']
    #allocation3 [shape = 's32[1]{0}', space=sflag, size = 0x4, scoped, tag = 'scoped memory for domain_trans_forward.1']
    #allocation4 [shape = 's32[1]{0}', space=sflag, size = 0x4, scoped, tag = 'scoped memory for domain_trans_forward.1']
    #allocation5 [shape = 'u8[262144]{0}', space=vmem, size = 0x40000, scoped, tag = 'input window, operand 1, single buffered']
    #allocation6 [shape = 's32[1]{0}', space=sflag, size = 0x4, scoped, tag = 'scoped memory for domain_trans_forward.1']
    #allocation7 [shape = 'u8[16384]{0}', space=vmem, size = 0x4000, scoped, tag = 'output window, operand 0, single buffered']
    %8 = vsyncpa [#allocation3], 0
    %9 = vsyncpa [#allocation6], 0
    %10 = vsyncpa [#allocation4], 0
    // Predicated region
    $region2: #{domain_trans_forward.1} parent=1 // pred_check
      _
    $region3: #{domain_trans_forward.1} parent=1 // pred_check_branch
      %12 = sbr.rel (0) target = $region5
    $region4: #{domain_trans_forward.1} parent=1 // pred_region
      %14 = vsyncadd [#allocation3], 0
      %s15 = sshll.u32 %s0, 4
      %s16 = int_to_ptr.hbm [resolvable:$true] %s15
      %s17 = sshll.u32 [#allocation2], 4
      %s18 = int_to_ptr.vmem [resolvable:$true] %s17
      %23 = dma.hbm_to_vmem [thread:$0]  %s16, 512, %s18, [#allocation3], 256, 256, 16
    $region5: #{domain_trans_forward.1} parent=1 // pred_fallthru
      _
    // Predicated region
    $region6: #{domain_trans_forward.1} parent=1 // pred_check
      _
    $region7: #{domain_trans_forward.1} parent=1 // pred_check_branch
      %25 = sbr.rel (0) target = $region9
    $region8: #{domain_trans_forward.1} parent=1 // pred_region
      %27 = vsyncadd [#allocation6], 0
      %s28 = sshll.u32 %s1, 4
      %s29 = int_to_ptr.hbm [resolvable:$true] %s28
      %s30 = sshll.u32 [#allocation5], 4
      %s31 = int_to_ptr.vmem [resolvable:$true] %s30
      %36 = dma.hbm_to_vmem [thread:$0]  %s29, 8192, %s31, [#allocation6], 256, 256, 16
    $region9: #{domain_trans_forward.1} parent=1 // pred_fallthru
      _
    // Predicated region
    $region10: #{domain_trans_forward.1} parent=1 // pred_check
      _
    $region11: #{domain_trans_forward.1} parent=1 // pred_check_branch
      %38 = sbr.rel (0) target = $region13
    $region12: #{domain_trans_forward.1} parent=1 // pred_region
      _
    $region13: #{domain_trans_forward.1} parent=1 // pred_fallthru
      _
    // Predicated region
    $region14: #{domain_trans_forward.1} parent=1 // pred_check
      _
    $region15: #{domain_trans_forward.1} parent=1 // pred_check_branch
      %40 = sbr.rel (0) target = $region17
    $region16: #{domain_trans_forward.1} parent=1 // pred_region
      %42 = dma.done [#allocation3], 512
    $region17: #{domain_trans_forward.1} parent=1 // pred_fallthru
      _
    // Predicated region
    $region18: #{domain_trans_forward.1} parent=1 // pred_check
      _
    $region19: #{domain_trans_forward.1} parent=1 // pred_check_branch
      %44 = sbr.rel (0) target = $region21
    $region20: #{domain_trans_forward.1} parent=1 // pred_region
      %46 = dma.done [#allocation6], 8192
    $region21: #{domain_trans_forward.1} parent=1 // pred_fallthru
      _
    %v47 = vld [vmem:[#allocation2] sm:$0xff]
    %v48 = vld [vmem:[#allocation2 + $0x8] sm:$0xff]
    %v49 = vld [vmem:[#allocation2 + $0x10] sm:$0xff]
    %v50 = vld [vmem:[#allocation2 + $0x18] sm:$0xff]
    %v51 = vld [vmem:[#allocation5] sm:$0xff]
    %v52 = vld [vmem:[#allocation5 + $0x8] sm:$0xff]
    %v53 = vld [vmem:[#allocation5 + $0x10] sm:$0xff]
    %v54 = vld [vmem:[#allocation5 + $0x18] sm:$0xff]
    %v55 = vld [vmem:[#allocation5 + $0x20] sm:$0xff]
    %v56 = vld [vmem:[#allocation5 + $0x28] sm:$0xff]
    %v57 = vld [vmem:[#allocation5 + $0x30] sm:$0xff]
    %v58 = vld [vmem:[#allocation5 + $0x38] sm:$0xff]
    %v59 = vld [vmem:[#allocation5 + $0x40] sm:$0xff]
    %v60 = vld [vmem:[#allocation5 + $0x48] sm:$0xff]
    %v61 = vld [vmem:[#allocation5 + $0x50] sm:$0xff]
    %v62 = vld [vmem:[#allocation5 + $0x58] sm:$0xff]
    %v63 = vld [vmem:[#allocation5 + $0x60] sm:$0xff]
    %v64 = vld [vmem:[#allocation5 + $0x68] sm:$0xff]
    %v65 = vld [vmem:[#allocation5 + $0x70] sm:$0xff]
    %v66 = vld [vmem:[#allocation5 + $0x78] sm:$0xff]
    %v67 = vld [vmem:[#allocation5 + $0x80] sm:$0xff]
    %v68 = vld [vmem:[#allocation5 + $0x88] sm:$0xff]
    %v69 = vld [vmem:[#allocation5 + $0x90] sm:$0xff]
    %v70 = vld [vmem:[#allocation5 + $0x98] sm:$0xff]
    %v71 = vld [vmem:[#allocation5 + $0xa0] sm:$0xff]
    %v72 = vld [vmem:[#allocation5 + $0xa8] sm:$0xff]
    %v73 = vld [vmem:[#allocation5 + $0xb0] sm:$0xff]
    %v74 = vld [vmem:[#allocation5 + $0xb8] sm:$0xff]
    %v75 = vld [vmem:[#allocation5 + $0xc0] sm:$0xff]
    %v76 = vld [vmem:[#allocation5 + $0xc8] sm:$0xff]
    %v77 = vld [vmem:[#allocation5 + $0xd0] sm:$0xff]
    %v78 = vld [vmem:[#allocation5 + $0xd8] sm:$0xff]
    %v79 = vld [vmem:[#allocation5 + $0xe0] sm:$0xff]
    %v80 = vld [vmem:[#allocation5 + $0xe8] sm:$0xff]
    %v81 = vld [vmem:[#allocation5 + $0xf0] sm:$0xff]
    %v82 = vld [vmem:[#allocation5 + $0xf8] sm:$0xff]
    %v83 = vld [vmem:[#allocation5 + $0x100] sm:$0xff]
    %v84 = vld [vmem:[#allocation5 + $0x108] sm:$0xff]
    %v85 = vld [vmem:[#allocation5 + $0x110] sm:$0xff]
    %v86 = vld [vmem:[#allocation5 + $0x118] sm:$0xff]
    %v87 = vld [vmem:[#allocation5 + $0x120] sm:$0xff]
    %v88 = vld [vmem:[#allocation5 + $0x128] sm:$0xff]
    %v89 = vld [vmem:[#allocation5 + $0x130] sm:$0xff]
    %v90 = vld [vmem:[#allocation5 + $0x138] sm:$0xff]
    %v91 = vld [vmem:[#allocation5 + $0x140] sm:$0xff]
    %v92 = vld [vmem:[#allocation5 + $0x148] sm:$0xff]
    %v93 = vld [vmem:[#allocation5 + $0x150] sm:$0xff]
    %v94 = vld [vmem:[#allocation5 + $0x158] sm:$0xff]
    %v95 = vld [vmem:[#allocation5 + $0x160] sm:$0xff]
    %v96 = vld [vmem:[#allocation5 + $0x168] sm:$0xff]
    %v97 = vld [vmem:[#allocation5 + $0x170] sm:$0xff]
    %v98 = vld [vmem:[#allocation5 + $0x178] sm:$0xff]
    %v99 = vld [vmem:[#allocation5 + $0x180] sm:$0xff]
    %v100 = vld [vmem:[#allocation5 + $0x188] sm:$0xff]
    %v101 = vld [vmem:[#allocation5 + $0x190] sm:$0xff]
    %v102 = vld [vmem:[#allocation5 + $0x198] sm:$0xff]
    %v103 = vld [vmem:[#allocation5 + $0x1a0] sm:$0xff]
    %v104 = vld [vmem:[#allocation5 + $0x1a8] sm:$0xff]
    %v105 = vld [vmem:[#allocation5 + $0x1b0] sm:$0xff]
    %v106 = vld [vmem:[#allocation5 + $0x1b8] sm:$0xff]
    %v107 = vld [vmem:[#allocation5 + $0x1c0] sm:$0xff]
    %v108 = vld [vmem:[#allocation5 + $0x1c8] sm:$0xff]
    %v109 = vld [vmem:[#allocation5 + $0x1d0] sm:$0xff]
    %v110 = vld [vmem:[#allocation5 + $0x1d8] sm:$0xff]
    %v111 = vld [vmem:[#allocation5 + $0x1e0] sm:$0xff]
    %v112 = vld [vmem:[#allocation5 + $0x1e8] sm:$0xff]
    %v113 = vld [vmem:[#allocation5 + $0x1f0] sm:$0xff]
    %v114 = vld [vmem:[#allocation5 + $0x1f8] sm:$0xff]
    %v115 = vld [vmem:[%s2] sm:$0x3]
    %v117 = vperm.slane %v115, 0
    %v118 = vperm.slane %v115, 1
    %121 = vmatpush.xpose.msra.mxu0 %v81
    %122 = vmatpush.xpose.msra.mxu0 %v79
    %123 = vmatpush.xpose.msra.mxu0 %v77
    %124 = vmatpush.xpose.msra.mxu0 %v75
    %125 = vmatpush.xpose.msra.mxu0 %v73
    %126 = vmatpush.xpose.msra.mxu0 %v71
    %127 = vmatpush.xpose.msra.mxu0 %v69
    %128 = vmatpush.xpose.msra.mxu0 %v67
    %129 = vmatpush.xpose.msra.mxu0 %v65
    %130 = vmatpush.xpose.msra.mxu0 %v63
    %131 = vmatpush.xpose.msra.mxu0 %v61
    %132 = vmatpush.xpose.msra.mxu0 %v59
    %133 = vmatpush.xpose.msra.mxu0 %v57
    %134 = vmatpush.xpose.msra.mxu0 %v55
    %135 = vmatpush.xpose.msra.mxu0 %v53
    %136 = vmatpush.xpose.msra.mxu0 %v51
    %137 = vmatmul.f32.gmra.mxu0 %v47
    %v138 = vpop.f32.mrf.mxu0
    %v139 = vadd.f32 %v117, %v138
    %140 = vmatmul.f32.gmra.mxu0 %v49
    %v141 = vpop.f32.mrf.mxu0
    %v142 = vadd.f32 %v117, %v141
    %143 = vdwg.mxu0
    %144 = vmatpush.xpose.msra.mxu0 %v82
    %145 = vmatpush.xpose.msra.mxu0 %v80
    %146 = vmatpush.xpose.msra.mxu0 %v78
    %147 = vmatpush.xpose.msra.mxu0 %v76
    %148 = vmatpush.xpose.msra.mxu0 %v74
    %149 = vmatpush.xpose.msra.mxu0 %v72
    %150 = vmatpush.xpose.msra.mxu0 %v70
    %151 = vmatpush.xpose.msra.mxu0 %v68
    %152 = vmatpush.xpose.msra.mxu0 %v66
    %153 = vmatpush.xpose.msra.mxu0 %v64
    %154 = vmatpush.xpose.msra.mxu0 %v62
    %155 = vmatpush.xpose.msra.mxu0 %v60
    %156 = vmatpush.xpose.msra.mxu0 %v58
    %157 = vmatpush.xpose.msra.mxu0 %v56
    %158 = vmatpush.xpose.msra.mxu0 %v54
    %159 = vmatpush.xpose.msra.mxu0 %v52
    %160 = vmatmul.f32.gmra.mxu0 %v48
    %v161 = vpop.f32.mrf.mxu0
    %v162 = vadd.f32 %v139, %v161
    %163 = vmatmul.f32.gmra.mxu0 %v50
    %v164 = vpop.f32.mrf.mxu0
    %v165 = vadd.f32 %v142, %v164
    %166 = vdwg.mxu0
    %167 = vmatpush.xpose.msra.mxu0 %v113
    %168 = vmatpush.xpose.msra.mxu0 %v111
    %169 = vmatpush.xpose.msra.mxu0 %v109
    %170 = vmatpush.xpose.msra.mxu0 %v107
    %171 = vmatpush.xpose.msra.mxu0 %v105
    %172 = vmatpush.xpose.msra.mxu0 %v103
    %173 = vmatpush.xpose.msra.mxu0 %v101
    %174 = vmatpush.xpose.msra.mxu0 %v99
    %175 = vmatpush.xpose.msra.mxu0 %v97
    %176 = vmatpush.xpose.msra.mxu0 %v95
    %177 = vmatpush.xpose.msra.mxu0 %v93
    %178 = vmatpush.xpose.msra.mxu0 %v91
    %179 = vmatpush.xpose.msra.mxu0 %v89
    %180 = vmatpush.xpose.msra.mxu0 %v87
    %181 = vmatpush.xpose.msra.mxu0 %v85
    %182 = vmatpush.xpose.msra.mxu0 %v83
    %183 = vmatmul.f32.gmra.mxu0 %v47
    %v184 = vpop.f32.mrf.mxu0
    %v185 = vadd.f32 %v118, %v184
    %186 = vmatmul.f32.gmra.mxu0 %v49
    %v187 = vpop.f32.mrf.mxu0
    %v188 = vadd.f32 %v118, %v187
    %189 = vdwg.mxu0
    %190 = vmatpush.xpose.msra.mxu0 %v114
    %191 = vmatpush.xpose.msra.mxu0 %v112
    %192 = vmatpush.xpose.msra.mxu0 %v110
    %193 = vmatpush.xpose.msra.mxu0 %v108
    %194 = vmatpush.xpose.msra.mxu0 %v106
    %195 = vmatpush.xpose.msra.mxu0 %v104
    %196 = vmatpush.xpose.msra.mxu0 %v102
    %197 = vmatpush.xpose.msra.mxu0 %v100
    %198 = vmatpush.xpose.msra.mxu0 %v98
    %199 = vmatpush.xpose.msra.mxu0 %v96
    %200 = vmatpush.xpose.msra.mxu0 %v94
    %201 = vmatpush.xpose.msra.mxu0 %v92
    %202 = vmatpush.xpose.msra.mxu0 %v90
    %203 = vmatpush.xpose.msra.mxu0 %v88
    %204 = vmatpush.xpose.msra.mxu0 %v86
    %205 = vmatpush.xpose.msra.mxu0 %v84
    %206 = vmatmul.f32.gmra.mxu0 %v48
    %v207 = vpop.f32.mrf.mxu0
    %v208 = vadd.f32 %v185, %v207
    %209 = vmatmul.f32.gmra.mxu0 %v50
    %v210 = vpop.f32.mrf.mxu0
    %v211 = vadd.f32 %v188, %v210
    %212 = vdwg.mxu0
    %213 = vst [vmem:[#allocation7] sm:$0xff] %v162
    %214 = vst [vmem:[#allocation7 + $0x8] sm:$0xff] %v208
    %215 = vst [vmem:[#allocation7 + $0x10] sm:$0xff] %v165
    %216 = vst [vmem:[#allocation7 + $0x18] sm:$0xff] %v211
    // Predicated region
    $region22: #{domain_trans_forward.1} parent=1 // pred_check
      _
    $region23: #{domain_trans_forward.1} parent=1 // pred_check_branch
      %218 = sbr.rel (0) target = $region25
    $region24: #{domain_trans_forward.1} parent=1 // pred_region
      %220 = vsyncadd [#allocation4], 0
      %s221 = sshll.u32 [#allocation7], 4
      %s222 = int_to_ptr.vmem [resolvable:$true] %s221
      %s223 = sshll.u32 %s3, 4
      %s224 = int_to_ptr.hbm [resolvable:$true] %s223
      %229 = dma.vmem_to_hbm [thread:$0]  %s222, 512, %s224, [#allocation4], 256, 256, 16
    $region25: #{domain_trans_forward.1} parent=1 // pred_fallthru
      _
    // Predicated region
    $region26: #{domain_trans_forward.1} parent=1 // pred_check
      _
    $region27: #{domain_trans_forward.1} parent=1 // pred_check_branch
      %231 = sbr.rel (0) target = $region29
    $region28: #{domain_trans_forward.1} parent=1 // pred_region
      %233 = dma.done [#allocation4], 512
    $region29: #{domain_trans_forward.1} parent=1 // pred_fallthru
      _
    %234 = vsyncpa [#allocation3], 1
    %235 = vsyncpa [#allocation6], 1
    %236 = vsyncpa [#allocation4], 1

</llo_original>
